<compile_context>
chip_gen: v7x
topology: tpu7x:2x2x1
jax: 0.10.0
libtpu: 0.0.40
codegen_flags: <defaults>
</compile_context>

<pallas_src>
import functools

import numpy as np

import jax
import jax.numpy as jnp
from jax.experimental import pallas as pl
from jax.experimental.pallas import tpu as pltpu


def _pixelcnn_block_kernel(xpad_ref, s_ref, mask_ref, w_in_ref, w_s_ref,
                           b_feat_ref, w_o_ref, b_o_ref, out_ref,
                           *, ntaps, dilation, shift, gated, do_skip,
                           out_channels):
    """One image per grid step.  All operands channel-first, H*W on lanes."""
    hw = out_ref.shape[2]

    # Conditioning 1x1 conv: (Cmid, Cs) @ (Cs, H*W) on the MXU, f32 accumulate.
    feat = jnp.dot(w_s_ref[...], s_ref[0], preferred_element_type=jnp.float32)

    # Causal taps along W.  Tap t reads the flat-padded input at static lane
    # offset t*dilation; the (1, H*W) mask zeroes columns that would read
    # across an image-row boundary of the flattened layout.  The sr == 0 tap
    # (current pixel) needs no mask; it was dropped in the wrapper for first=True.
    for t in range(ntaps):
        off = t * dilation
        sr = shift - off                       # static right-shift of this tap
        xt = xpad_ref[0, :, off:off + hw]      # (Cin, H*W) lane-offset window
        if sr > 0:
            xt = xt * mask_ref[t]              # broadcast over channels
        feat = feat + jnp.dot(w_in_ref[t], xt,
                              preferred_element_type=jnp.float32)

    feat = feat + b_feat_ref[...]              # fused (b_in + b_s), lane-broadcast

    # Activation in f32 (VPU/EUP).  For gated, mid channels were permuted in
    # the wrapper so torch's strided split (0::2 tanh, 1::2 sigmoid) becomes
    # two contiguous halves.
    if gated:
        h = jnp.tanh(feat[:out_channels]) * jax.nn.sigmoid(feat[out_channels:])
    else:
        h = jnp.maximum(feat, 0.0)

    # Output 1x1 conv + optional residual skip.
    out = jnp.dot(w_o_ref[...], h.astype(w_o_ref.dtype),
                  preferred_element_type=jnp.float32)
    out = out + b_o_ref[...]
    if do_skip:
        # the unshifted window of the padded input is x itself
        out = out + xpad_ref[0, :, shift:shift + hw].astype(jnp.float32)

    # Lane-dense store: last dim is H*W (multiple of 128), no masked vst lanes.
    out_ref[0] = out.astype(out_ref.dtype)


def pixelcnn_block_forward(x_nchw, s_nchw, params, *, kernel_size, dilation=1,
                           gated=False, first=False,
                           compute_dtype=jnp.float32):
    """Pallas implementation of PixelCNNBlock.forward. Returns (out, s_code) in NCHW."""
    N, Cin, H, W = x_nchw.shape
    Cs = s_nchw.shape[1]
    w_in, b_in = params["w_in"], params["b_in"]      # (K, Cin, Cmid), (1, Cmid)
    w_s, b_s = params["w_s"], params["b_s"]          # (Cs, Cmid),     (1, Cmid)
    w_o, b_o = params["w_o"], params["b_o"]          # (Cout, Cout),   (1, Cout)
    K, _, Cmid = w_in.shape
    Cout = w_o.shape[1]
    do_skip = (Cout == Cin) and (not first)
    shift = dilation * (kernel_size - 1)
    HW = H * W
    HWp = HW + shift

    # first=True masks the tap that sees the current pixel -> drop it instead
    # of multiplying by a zeroed weight.
    ntaps = K - 1 if first else K
    if ntaps < 1:
        raise NotImplementedError(
            "kernel_size == 1 with first=True has no input taps")

    # ---- host-side weight packing (tiny; in a real model pack once) ----
    w_s_k = w_s.T                                     # (Cmid, Cs)
    w_in_k = jnp.transpose(w_in[:ntaps], (0, 2, 1))   # (ntaps, Cmid, Cin)
    b_feat = (b_in + b_s).reshape(Cmid, 1)            # fused bias
    w_o_k = w_o.T                                     # (Cout, Cout) = (out, in)
    b_o_k = b_o.reshape(Cout, 1)
    if gated:
        # Reorder mid channels so torch's 0::2 / 1::2 split becomes halves.
        perm = jnp.concatenate([jnp.arange(0, Cmid, 2), jnp.arange(1, Cmid, 2)])
        w_s_k = w_s_k[perm]
        w_in_k = w_in_k[:, perm, :]
        b_feat = b_feat[perm]

    # ---- inputs: free NCHW -> (N, C, H*W) reshapes + tiny causal left-pad ----
    x_flat = x_nchw.reshape(N, Cin, HW)
    xpad = jnp.pad(x_flat, ((0, 0), (0, 0), (shift, 0)))    # (N, Cin, HW+shift)
    s_flat = s_nchw.reshape(N, Cs, HW)

    # Static per-tap row-boundary masks (tap t has right-shift sr = shift - t*dil).
    n_masked = max(K - 1, 1)
    col = np.arange(HW) % W
    mask_np = np.ones((n_masked, 1, HW), np.float32)
    for t in range(K - 1):
        mask_np[t, 0] = (col >= (shift - t * dilation)).astype(np.float32)

    cd = compute_dtype
    xpad_c = xpad.astype(cd)
    s_c = s_flat.astype(cd)
    mask_c = jnp.asarray(mask_np).astype(cd)
    w_in_c = w_in_k.astype(cd)
    w_s_c = w_s_k.astype(cd)
    w_o_c = w_o_k.astype(cd)
    b_feat = b_feat.astype(jnp.float32)   # biases + accumulation stay f32
    b_o_k = b_o_k.astype(jnp.float32)

    kern = functools.partial(
        _pixelcnn_block_kernel, ntaps=ntaps, dilation=dilation, shift=shift,
        gated=gated, do_skip=do_skip, out_channels=Cout)

    # Grid over batch only: one whole image per step (a few KB of VMEM), marked
    # "parallel" so v7x's two TensorCores split N.  Weight/mask operands have
    # constant index maps so their blocks are reused across steps (they could
    # additionally be single-buffered via pipeline_mode=pl.Buffered(1)).
    out_flat = pl.pallas_call(
        kern,
        out_shape=jax.ShapeDtypeStruct((N, Cout, HW), x_nchw.dtype),
        grid_spec=pltpu.PrefetchScalarGridSpec(
            num_scalar_prefetch=0,
            grid=(N,),
            in_specs=[
                pl.BlockSpec((1, Cin, HWp), lambda n: (n, 0, 0)),
                pl.BlockSpec((1, Cs, HW), lambda n: (n, 0, 0)),
                pl.BlockSpec((n_masked, 1, HW), lambda n: (0, 0, 0)),
                pl.BlockSpec((ntaps, Cmid, Cin), lambda n: (0, 0, 0)),
                pl.BlockSpec((Cmid, Cs), lambda n: (0, 0)),
                pl.BlockSpec((Cmid, 1), lambda n: (0, 0)),
                pl.BlockSpec((Cout, Cout), lambda n: (0, 0)),
                pl.BlockSpec((Cout, 1), lambda n: (0, 0)),
            ],
            out_specs=pl.BlockSpec((1, Cout, HW), lambda n: (n, 0, 0)),
        ),
        compiler_params=pltpu.CompilerParams(
            dimension_semantics=("parallel",),
            vmem_limit_bytes=32 * 1024 * 1024),
    )(xpad_c, s_c, mask_c, w_in_c, w_s_c, b_feat, w_o_c, b_o_k)

    out_nchw = out_flat.reshape(N, Cout, H, W)   # free row-major reshape
    return out_nchw, s_nchw


def pixelcnn_block_reference(x, s, params, *, kernel_size, dilation=1,
                             gated=False, first=False):
    """Pure-JAX reference with the module's semantics (NCHW, f32)."""
    N, Cin, H, W = x.shape
    w_in, b_in = params["w_in"], params["b_in"]
    w_s, b_s = params["w_s"], params["b_s"]
    w_o, b_o = params["w_o"], params["b_o"]
    K = w_in.shape[0]
    Cout = w_o.shape[1]
    do_skip = (Cout == Cin) and (not first)
    shift = dilation * (K - 1)
    ntaps = K - 1 if first else K   # masked tap contributes nothing

    xpad = jnp.pad(x, ((0, 0), (0, 0), (0, 0), (shift, 0)))
    feat = jnp.einsum("nchw,cm->nmhw", s, w_s) + (b_s + b_in).reshape(1, -1, 1, 1)
    for t in range(ntaps):
        off = t * dilation
        feat = feat + jnp.einsum("nchw,cm->nmhw",
                                 xpad[:, :, :, off:off + W], w_in[t])
    if gated:
        feat = jnp.tanh(feat[:, 0::2]) * jax.nn.sigmoid(feat[:, 1::2])
    else:
        feat = jnp.maximum(feat, 0.0)
    out = jnp.einsum("nmhw,mo->nohw", feat, w_o) + b_o.reshape(1, -1, 1, 1)
    if do_skip:
        out = out + x
    return out, s


def init_params(key, in_channels, out_channels, s_code_channels, kernel_size, gated):
    """Deterministic synthetic init (uniform, fan-in scaled) matching module shapes."""
    mid = out_channels * 2 if gated else out_channels
    ks = jax.random.split(key, 6)

    def u(k, shape, fan_in):
        bound = 1.0 / float(fan_in) ** 0.5
        return jax.random.uniform(k, shape, jnp.float32, -bound, bound)

    return {
        "w_in": u(ks[0], (kernel_size, in_channels, mid), in_channels * kernel_size),
        "b_in": u(ks[1], (1, mid), in_channels * kernel_size),
        "w_s": u(ks[2], (s_code_channels, mid), s_code_channels),
        "b_s": u(ks[3], (1, mid), s_code_channels),
        "w_o": u(ks[4], (out_channels, out_channels), out_channels),
        "b_o": u(ks[5], (1, out_channels), out_channels),
    }


if __name__ == "__main__":
    key = jax.random.PRNGKey(0)
    N, Cin, H, W = 2, 4, 16, 16
    Cs, Cout, K = 8, 4, 3

    configs = [
        dict(gated=False, first=False, dilation=1),
        dict(gated=True, first=False, dilation=1),
        dict(gated=False, first=True, dilation=1),
        dict(gated=True, first=False, dilation=2),
    ]
    for cfg in configs:
        kp, kx, ks_, key = jax.random.split(key, 4)
        params = init_params(kp, Cin, Cout, Cs, K, cfg["gated"])
        x = jax.random.normal(kx, (N, Cin, H, W), jnp.float32)
        s_code = jax.random.normal(ks_, (N, Cs, H, W), jnp.float32)

        out, s_out = pixelcnn_block_forward(x, s_code, params, kernel_size=K, **cfg)
        out = jax.block_until_ready(out)

        ref, _ = pixelcnn_block_reference(x, s_code, params, kernel_size=K, **cfg)
        assert out.shape == (N, Cout, H, W)
        assert jnp.allclose(out, ref, atol=1e-4, rtol=1e-4), f"mismatch: {cfg}"
        assert jnp.array_equal(s_out, s_code)

    # bf16 operand path (v6e/v7x): bf16 MXU inputs, f32 accumulation/activation.
    kp, kx, ks_, key = jax.random.split(key, 4)
    params = init_params(kp, Cin, Cout, Cs, K, True)
    x = jax.random.normal(kx, (N, Cin, H, W), jnp.float32)
    s_code = jax.random.normal(ks_, (N, Cs, H, W), jnp.float32)
    out_bf16, _ = pixelcnn_block_forward(
        x, s_code, params, kernel_size=K, dilation=1, gated=True, first=False,
        compute_dtype=jnp.bfloat16)
    out_bf16 = jax.block_until_ready(out_bf16)
    ref, _ = pixelcnn_block_reference(
        x, s_code, params, kernel_size=K, dilation=1, gated=True, first=False)
    assert out_bf16.shape == (N, Cout, H, W)
    assert jnp.allclose(out_bf16, ref, atol=1e-1, rtol=1e-1)

    print("KERNEL_OK")
</pallas_src>

<mosaic_0001>
module attributes {stable_mosaic.version = 11 : i64} {
  func.func @_pixelcnn_block_kernel(%arg0: i32, %arg1: memref<1x4x258xf32, #tpu.memory_space<vmem>>, %arg2: memref<1x8x256xf32, #tpu.memory_space<vmem>>, %arg3: memref<2x1x256xf32, #tpu.memory_space<vmem>>, %arg4: memref<3x4x4xf32, #tpu.memory_space<vmem>>, %arg5: memref<4x8xf32, #tpu.memory_space<vmem>>, %arg6: memref<4x1xf32, #tpu.memory_space<vmem>>, %arg7: memref<4x4xf32, #tpu.memory_space<vmem>>, %arg8: memref<4x1xf32, #tpu.memory_space<vmem>>, %arg9: memref<1x4x256xf32, #tpu.memory_space<vmem>>) attributes {dimension_semantics = [#tpu.dimension_semantics<parallel>], iteration_bounds = array<i64: 2>, scalar_prefetch = 0 : i64, scratch_operands = 0 : i64, tpu.core_type = #tpu.core_type<tc>, window_params = [{transform_indices = @transform_0, window_bounds = array<i64: 1, 4, 258>}, {transform_indices = @transform_1, window_bounds = array<i64: 1, 8, 256>}, {pipeline_mode = #tpu.pipeline_mode<synchronous>, transform_indices = @transform_2, window_bounds = array<i64: 2, 1, 256>}, {pipeline_mode = #tpu.pipeline_mode<synchronous>, transform_indices = @transform_3, window_bounds = array<i64: 3, 4, 4>}, {pipeline_mode = #tpu.pipeline_mode<synchronous>, transform_indices = @transform_4, window_bounds = array<i64: 4, 8>}, {pipeline_mode = #tpu.pipeline_mode<synchronous>, transform_indices = @transform_5, window_bounds = array<i64: 4, 1>}, {pipeline_mode = #tpu.pipeline_mode<synchronous>, transform_indices = @transform_6, window_bounds = array<i64: 4, 4>}, {pipeline_mode = #tpu.pipeline_mode<synchronous>, transform_indices = @transform_7, window_bounds = array<i64: 4, 1>}, {transform_indices = @transform_8, window_bounds = array<i64: 1, 4, 256>}]} {
    %c0 = arith.constant 0 : index
    %c0_0 = arith.constant 0 : index
    %0 = vector.load %arg5[%c0, %c0_0] : memref<4x8xf32, #tpu.memory_space<vmem>>, vector<4x8xf32>
    %c0_1 = arith.constant 0 : index
    %c0_2 = arith.constant 0 : index
    %c0_3 = arith.constant 0 : index
    %1 = vector.load %arg2[%c0_1, %c0_2, %c0_3] : memref<1x8x256xf32, #tpu.memory_space<vmem>>, vector<1x8x256xf32>
    %2 = vector.shape_cast %1 : vector<1x8x256xf32> to vector<8x256xf32>
    %cst = arith.constant dense<0.000000e+00> : vector<4x256xf32>
    %3 = tpu.matmul %0, %2, %cst {dimension_numbers = #tpu.dot_dimension_numbers<[1], [0], [0], [1], [0, 0, 1, 1], [], []>} : vector<4x8xf32>, vector<8x256xf32>, vector<4x256xf32> -> vector<4x256xf32>
    %c0_4 = arith.constant 0 : index
    %c0_5 = arith.constant 0 : index
    %c0_6 = arith.constant 0 : index
    %4 = vector.load %arg1[%c0_4, %c0_5, %c0_6] : memref<1x4x258xf32, #tpu.memory_space<vmem>>, vector<1x4x256xf32>
    %5 = vector.shape_cast %4 : vector<1x4x256xf32> to vector<4x256xf32>
    %c0_7 = arith.constant 0 : index
    %c0_8 = arith.constant 0 : index
    %c0_9 = arith.constant 0 : index
    %6 = vector.load %arg3[%c0_7, %c0_8, %c0_9] : memref<2x1x256xf32, #tpu.memory_space<vmem>>, vector<1x1x256xf32>
    %7 = vector.shape_cast %6 : vector<1x1x256xf32> to vector<1x256xf32>
    %8 = vector.broadcast %7 : vector<1x256xf32> to vector<4x256xf32>
    %9 = arith.mulf %5, %8 : vector<4x256xf32>
    %c0_10 = arith.constant 0 : index
    %c0_11 = arith.constant 0 : index
    %c0_12 = arith.constant 0 : index
    %10 = vector.load %arg4[%c0_10, %c0_11, %c0_12] : memref<3x4x4xf32, #tpu.memory_space<vmem>>, vector<1x4x4xf32>
    %11 = vector.shape_cast %10 : vector<1x4x4xf32> to vector<4x4xf32>
    %cst_13 = arith.constant dense<0.000000e+00> : vector<4x256xf32>
    %12 = tpu.matmul %11, %9, %cst_13 {dimension_numbers = #tpu.dot_dimension_numbers<[1], [0], [0], [1], [0, 0, 1, 1], [], []>} : vector<4x4xf32>, vector<4x256xf32>, vector<4x256xf32> -> vector<4x256xf32>
    %13 = arith.addf %3, %12 : vector<4x256xf32>
    %c0_14 = arith.constant 0 : index
    %c0_15 = arith.constant 0 : index
    %c1 = arith.constant 1 : index
    %14 = vector.load %arg1[%c0_14, %c0_15, %c1] : memref<1x4x258xf32, #tpu.memory_space<vmem>>, vector<1x4x256xf32>
    %15 = vector.shape_cast %14 : vector<1x4x256xf32> to vector<4x256xf32>
    %c1_16 = arith.constant 1 : index
    %c0_17 = arith.constant 0 : index
    %c0_18 = arith.constant 0 : index
    %16 = vector.load %arg3[%c1_16, %c0_17, %c0_18] : memref<2x1x256xf32, #tpu.memory_space<vmem>>, vector<1x1x256xf32>
    %17 = vector.shape_cast %16 : vector<1x1x256xf32> to vector<1x256xf32>
    %18 = vector.broadcast %17 : vector<1x256xf32> to vector<4x256xf32>
    %19 = arith.mulf %15, %18 : vector<4x256xf32>
    %c1_19 = arith.constant 1 : index
    %c0_20 = arith.constant 0 : index
    %c0_21 = arith.constant 0 : index
    %20 = vector.load %arg4[%c1_19, %c0_20, %c0_21] : memref<3x4x4xf32, #tpu.memory_space<vmem>>, vector<1x4x4xf32>
    %21 = vector.shape_cast %20 : vector<1x4x4xf32> to vector<4x4xf32>
    %cst_22 = arith.constant dense<0.000000e+00> : vector<4x256xf32>
    %22 = tpu.matmul %21, %19, %cst_22 {dimension_numbers = #tpu.dot_dimension_numbers<[1], [0], [0], [1], [0, 0, 1, 1], [], []>} : vector<4x4xf32>, vector<4x256xf32>, vector<4x256xf32> -> vector<4x256xf32>
    %23 = arith.addf %13, %22 : vector<4x256xf32>
    %c0_23 = arith.constant 0 : index
    %c0_24 = arith.constant 0 : index
    %c2 = arith.constant 2 : index
    %24 = vector.load %arg1[%c0_23, %c0_24, %c2] : memref<1x4x258xf32, #tpu.memory_space<vmem>>, vector<1x4x256xf32>
    %25 = vector.shape_cast %24 : vector<1x4x256xf32> to vector<4x256xf32>
    %c2_25 = arith.constant 2 : index
    %c0_26 = arith.constant 0 : index
    %c0_27 = arith.constant 0 : index
    %26 = vector.load %arg4[%c2_25, %c0_26, %c0_27] : memref<3x4x4xf32, #tpu.memory_space<vmem>>, vector<1x4x4xf32>
    %27 = vector.shape_cast %26 : vector<1x4x4xf32> to vector<4x4xf32>
    %cst_28 = arith.constant dense<0.000000e+00> : vector<4x256xf32>
    %28 = tpu.matmul %27, %25, %cst_28 {dimension_numbers = #tpu.dot_dimension_numbers<[1], [0], [0], [1], [0, 0, 1, 1], [], []>} : vector<4x4xf32>, vector<4x256xf32>, vector<4x256xf32> -> vector<4x256xf32>
    %29 = arith.addf %23, %28 : vector<4x256xf32>
    %c0_29 = arith.constant 0 : index
    %c0_30 = arith.constant 0 : index
    %30 = vector.load %arg6[%c0_29, %c0_30] : memref<4x1xf32, #tpu.memory_space<vmem>>, vector<4x1xf32>
    %31 = vector.broadcast %30 : vector<4x1xf32> to vector<4x256xf32>
    %32 = arith.addf %29, %31 : vector<4x256xf32>
    %cst_31 = arith.constant 0.000000e+00 : f32
    %33 = vector.broadcast %cst_31 : f32 to vector<4x256xf32>
    %34 = arith.maximumf %32, %33 : vector<4x256xf32>
    %c0_32 = arith.constant 0 : index
    %c0_33 = arith.constant 0 : index
    %35 = vector.load %arg7[%c0_32, %c0_33] : memref<4x4xf32, #tpu.memory_space<vmem>>, vector<4x4xf32>
    %cst_34 = arith.constant dense<0.000000e+00> : vector<4x256xf32>
    %36 = tpu.matmul %35, %34, %cst_34 {dimension_numbers = #tpu.dot_dimension_numbers<[1], [0], [0], [1], [0, 0, 1, 1], [], []>} : vector<4x4xf32>, vector<4x256xf32>, vector<4x256xf32> -> vector<4x256xf32>
    %c0_35 = arith.constant 0 : index
    %c0_36 = arith.constant 0 : index
    %37 = vector.load %arg8[%c0_35, %c0_36] : memref<4x1xf32, #tpu.memory_space<vmem>>, vector<4x1xf32>
    %38 = vector.broadcast %37 : vector<4x1xf32> to vector<4x256xf32>
    %39 = arith.addf %36, %38 : vector<4x256xf32>
    %c0_37 = arith.constant 0 : index
    %c0_38 = arith.constant 0 : index
    %c2_39 = arith.constant 2 : index
    %40 = vector.load %arg1[%c0_37, %c0_38, %c2_39] : memref<1x4x258xf32, #tpu.memory_space<vmem>>, vector<1x4x256xf32>
    %41 = vector.shape_cast %40 : vector<1x4x256xf32> to vector<4x256xf32>
    %42 = arith.addf %39, %41 : vector<4x256xf32>
    %c0_40 = arith.constant 0 : index
    %c0_41 = arith.constant 0 : index
    %c0_42 = arith.constant 0 : index
    %43 = vector.load %arg9[%c0_40, %c0_41, %c0_42] : memref<1x4x256xf32, #tpu.memory_space<vmem>>, vector<1x4x256xf32>
    %44 = vector.shape_cast %43 : vector<1x4x256xf32> to vector<4x256xf32>
    %45 = vector.shape_cast %42 : vector<4x256xf32> to vector<1x4x256xf32>
    tpu.vector_store %arg9[%c0_40, %c0_41, %c0_42], %45 {strides = array<i32>} : memref<1x4x256xf32, #tpu.memory_space<vmem>>, vector<1x4x256xf32>,
    return
  }
  func.func @transform_0(%arg0: i32) -> (i32, i32, i32) {
    %c0_i32 = arith.constant 0 : i32
    %c0_i32_0 = arith.constant 0 : i32
    %c0_i32_1 = arith.constant 0 : i32
    return %arg0, %c0_i32, %c0_i32_0 : i32, i32, i32
  }
  func.func @transform_1(%arg0: i32) -> (i32, i32, i32) {
    %c0_i32 = arith.constant 0 : i32
    %c0_i32_0 = arith.constant 0 : i32
    %c0_i32_1 = arith.constant 0 : i32
    return %arg0, %c0_i32, %c0_i32_0 : i32, i32, i32
  }
  func.func @transform_2(%arg0: i32) -> (i32, i32, i32) {
    %c0_i32 = arith.constant 0 : i32
    %c0_i32_0 = arith.constant 0 : i32
    %c0_i32_1 = arith.constant 0 : i32
    %c0_i32_2 = arith.constant 0 : i32
    return %c0_i32, %c0_i32_0, %c0_i32_1 : i32, i32, i32
  }
  func.func @transform_3(%arg0: i32) -> (i32, i32, i32) {
    %c0_i32 = arith.constant 0 : i32
    %c0_i32_0 = arith.constant 0 : i32
    %c0_i32_1 = arith.constant 0 : i32
    %c0_i32_2 = arith.constant 0 : i32
    return %c0_i32, %c0_i32_0, %c0_i32_1 : i32, i32, i32
  }
  func.func @transform_4(%arg0: i32) -> (i32, i32) {
    %c0_i32 = arith.constant 0 : i32
    %c0_i32_0 = arith.constant 0 : i32
    %c0_i32_1 = arith.constant 0 : i32
    return %c0_i32, %c0_i32_0 : i32, i32
  }
  func.func @transform_5(%arg0: i32) -> (i32, i32) {
    %c0_i32 = arith.constant 0 : i32
    %c0_i32_0 = arith.constant 0 : i32
    %c0_i32_1 = arith.constant 0 : i32
    return %c0_i32, %c0_i32_0 : i32, i32
  }
  func.func @transform_6(%arg0: i32) -> (i32, i32) {
    %c0_i32 = arith.constant 0 : i32
    %c0_i32_0 = arith.constant 0 : i32
    %c0_i32_1 = arith.constant 0 : i32
    return %c0_i32, %c0_i32_0 : i32, i32
  }
  func.func @transform_7(%arg0: i32) -> (i32, i32) {
    %c0_i32 = arith.constant 0 : i32
    %c0_i32_0 = arith.constant 0 : i32
    %c0_i32_1 = arith.constant 0 : i32
    return %c0_i32, %c0_i32_0 : i32, i32
  }
  func.func @transform_8(%arg0: i32) -> (i32, i32, i32) {
    %c0_i32 = arith.constant 0 : i32
    %c0_i32_0 = arith.constant 0 : i32
    %c0_i32_1 = arith.constant 0 : i32
    return %arg0, %c0_i32, %c0_i32_0 : i32, i32, i32
  }
}

</mosaic_0001>

<llo_original>
// kernel: tpu_custom_call.1
$region0: #{tpu_custom_call.1}
  #allocation0 [shape = 'u32[]', space=smem, size = 0x4, offset = 0x4, fixed_abs, tag = 'smem constant byte address 0x4 - core index']
  #allocation1 [shape = 'u32[144,128]{1,0:T(1,128)}', space=vmem, size = 0x12000, scoped, tag = 'internal scratch']
  %s0 = inlined_call_operand.hbm [shape: f32[2,4,258], index: 0, kind: input, shape index: {}]
  %s1 = inlined_call_operand.hbm [shape: f32[2,8,256], index: 1, kind: input, shape index: {}]
  %s2 = inlined_call_operand.vmem [shape: f32[2,1,256], index: 2, kind: input, shape index: {}]
  %s3 = inlined_call_operand.vmem [shape: f32[3,4,4], index: 3, kind: input, shape index: {}]
  %s4 = inlined_call_operand.vmem [shape: f32[4,8], index: 4, kind: input, shape index: {}]
  %s5 = inlined_call_operand.vmem [shape: f32[4,1], index: 5, kind: input, shape index: {}]
  %s6 = inlined_call_operand.vmem [shape: f32[4,4], index: 6, kind: input, shape index: {}]
  %s7 = inlined_call_operand.vmem [shape: f32[4,1], index: 7, kind: input, shape index: {}]
  %s8 = inlined_call_operand.hbm [shape: f32[2,4,256], index: 8, kind: output, shape index: {}]
  %s9 = sld [smem:[#allocation0]]
  $region73: #{tpu_custom_call.1} parent=0
    _
  %s11 = ssub.s32 1, %s9
  %s12 = scalar_select 0, %s11, %s9
  $region1: #{tpu_custom_call.1} parent=0
    #allocation2 [shape = 'u8[12288]{0}', space=vmem, size = 0x3000, scoped, tag = 'input window, operand 0']
    #allocation3 [shape = 's32[2]{0}', space=sflag, size = 0x8, scoped, tag = 'scoped memory for tpu_custom_call.1']
    #allocation4 [shape = 's32[2]{0}', space=sflag, size = 0x8, scoped, tag = 'scoped memory for tpu_custom_call.1']
    #allocation5 [shape = 'u8[16384]{0}', space=vmem, size = 0x4000, scoped, tag = 'input window, operand 1']
    #allocation6 [shape = 's32[2]{0}', space=sflag, size = 0x8, scoped, tag = 'scoped memory for tpu_custom_call.1']
    #allocation7 [shape = 'u8[8192]{0}', space=vmem, size = 0x2000, scoped, tag = 'output window, operand 0']
    %13 = vsyncpa [#allocation3], 0
    %s14 = scalar_lea.sflag [#allocation3], 1
    %15 = vsyncpa %s14, 0
    %16 = vsyncpa [#allocation6], 0
    %s17 = scalar_lea.sflag [#allocation6], 1
    %18 = vsyncpa %s17, 0
    %19 = vsyncpa [#allocation4], 0
    %s20 = scalar_lea.sflag [#allocation4], 1
    %21 = vsyncpa %s20, 0
    loop: start=0, step=1, limit=4
    $region2: #{tpu_custom_call.1} parent=1 // loop_pre_header
      _
    $region3: #{tpu_custom_call.1} parent=1 // loop_header
      %s23 = sphi 0, %s27
      %p24 = scmp.ge.s32.totalorder %s23, 4
      %s33 = sphi 0, %s35
      %s36 = sphi 0, %s33
      %s37 = sphi 0, %s36
      %s53 = sphi 0, %s37
      %s59 = sphi 0, %s61
      %s62 = sphi 0, %s59
      %s63 = sphi 0, %s62
      %s79 = sphi 0, %s63
      %s83 = sphi 0, %s83
      %s85 = sphi 0, %s83
      %s86 = sphi 0, %s85
      %s100 = sphi 0, %s86
      %s104 = sphi 0, %s104
      %s106 = sphi 0, %s104
      %s107 = sphi 0, %s106
      %s121 = sphi 0, %s107
      %s125 = sphi 0, %s125
      %s127 = sphi 0, %s125
      %s128 = sphi 0, %s127
      %s142 = sphi 0, %s128
      %s146 = sphi 0, %s146
      %s148 = sphi 0, %s146
      %s149 = sphi 0, %s148
      %s163 = sphi 0, %s149
      %s167 = sphi 0, %s167
      %s169 = sphi 0, %s167
      %s170 = sphi 0, %s169
      %s184 = sphi 0, %s170
      %s188 = sphi 0, %s188
      %s190 = sphi 0, %s188
      %s191 = sphi 0, %s190
      %s205 = sphi 0, %s191
      %s211 = sphi 0, %s213
      %s214 = sphi 0, %s211
      %s215 = sphi 0, %s214
      %s231 = sphi 0, %s215
    $region4: #{tpu_custom_call.1} parent=1 // loop_header_branch
      %26 = sbr.rel (%p24) target = $region8
    $region5: #{tpu_custom_call.1} parent=1 // loop_body
      %s28 = ssub.s32 %s23, 1
      %s29 = ssub.s32 %s23, 2
      %s30 = sadd.s32 %s23, 1
      %s31 = ssub.s32 %s23, %s30
      %p32 = scmp.eq.s32.totalorder %s31, 0
      %s34 = sadd.s32 %s33, 1
      %s35 = scalar_select %p32, %s33, %s34
      %p38 = pneg %p32
      %p39 = scmp.eq.s32.totalorder %s23, 1
      %p40 = por %p38, %p39
      %p41 = scmp.ne.s32.totalorder %s33, %s36
      %p42 = scmp.eq.s32.totalorder %s23, 0
      %p43 = por %p41, %p42
      %p44 = scmp.ne.s32.totalorder %s33, %s36
      %p45 = scmp.eq.s32.totalorder %s28, 1
      %p46 = por %p44, %p45
      %p47 = scmp.ne.s32.totalorder %s36, %s37
      %p48 = scmp.eq.s32.totalorder %s28, 0
      %p49 = por %p47, %p48
      %p50 = scmp.ne.s32.totalorder %s36, %s37
      %p51 = scmp.eq.s32.totalorder %s29, 1
      %p52 = por %p50, %p51
      %p54 = scmp.ne.s32.totalorder %s37, %s53
      %p55 = scmp.eq.s32.totalorder %s29, 0
      %p56 = por %p54, %p55
      %s57 = ssub.s32 %s23, %s30
      %p58 = scmp.eq.s32.totalorder %s57, 0
      %s60 = sadd.s32 %s59, 1
      %s61 = scalar_select %p58, %s59, %s60
      %p64 = pneg %p58
      %p65 = scmp.eq.s32.totalorder %s23, 1
      %p66 = por %p64, %p65
      %p67 = scmp.ne.s32.totalorder %s59, %s62
      %p68 = scmp.eq.s32.totalorder %s23, 0
      %p69 = por %p67, %p68
      %p70 = scmp.ne.s32.totalorder %s59, %s62
      %p71 = scmp.eq.s32.totalorder %s28, 1
      %p72 = por %p70, %p71
      %p73 = scmp.ne.s32.totalorder %s62, %s63
      %p74 = scmp.eq.s32.totalorder %s28, 0
      %p75 = por %p73, %p74
      %p76 = scmp.ne.s32.totalorder %s62, %s63
      %p77 = scmp.eq.s32.totalorder %s29, 1
      %p78 = por %p76, %p77
      %p80 = scmp.ne.s32.totalorder %s63, %s79
      %p81 = scmp.eq.s32.totalorder %s29, 0
      %p82 = por %p80, %p81
      %s84 = sadd.s32 %s83, 1
      %p87 = scmp.eq.s32.totalorder %s23, 1
      %p88 = scmp.ne.s32.totalorder %s83, %s85
      %p89 = scmp.eq.s32.totalorder %s23, 0
      %p90 = por %p88, %p89
      %p91 = scmp.ne.s32.totalorder %s83, %s85
      %p92 = scmp.eq.s32.totalorder %s28, 1
      %p93 = por %p91, %p92
      %p94 = scmp.ne.s32.totalorder %s85, %s86
      %p95 = scmp.eq.s32.totalorder %s28, 0
      %p96 = por %p94, %p95
      %p97 = scmp.ne.s32.totalorder %s85, %s86
      %p98 = scmp.eq.s32.totalorder %s29, 1
      %p99 = por %p97, %p98
      %p101 = scmp.ne.s32.totalorder %s86, %s100
      %p102 = scmp.eq.s32.totalorder %s29, 0
      %p103 = por %p101, %p102
      %s105 = sadd.s32 %s104, 1
      %p108 = scmp.eq.s32.totalorder %s23, 1
      %p109 = scmp.ne.s32.totalorder %s104, %s106
      %p110 = scmp.eq.s32.totalorder %s23, 0
      %p111 = por %p109, %p110
      %p112 = scmp.ne.s32.totalorder %s104, %s106
      %p113 = scmp.eq.s32.totalorder %s28, 1
      %p114 = por %p112, %p113
      %p115 = scmp.ne.s32.totalorder %s106, %s107
      %p116 = scmp.eq.s32.totalorder %s28, 0
      %p117 = por %p115, %p116
      %p118 = scmp.ne.s32.totalorder %s106, %s107
      %p119 = scmp.eq.s32.totalorder %s29, 1
      %p120 = por %p118, %p119
      %p122 = scmp.ne.s32.totalorder %s107, %s121
      %p123 = scmp.eq.s32.totalorder %s29, 0
      %p124 = por %p122, %p123
      %s126 = sadd.s32 %s125, 1
      %p129 = scmp.eq.s32.totalorder %s23, 1
      %p130 = scmp.ne.s32.totalorder %s125, %s127
      %p131 = scmp.eq.s32.totalorder %s23, 0
      %p132 = por %p130, %p131
      %p133 = scmp.ne.s32.totalorder %s125, %s127
      %p134 = scmp.eq.s32.totalorder %s28, 1
      %p135 = por %p133, %p134
      %p136 = scmp.ne.s32.totalorder %s127, %s128
      %p137 = scmp.eq.s32.totalorder %s28, 0
      %p138 = por %p136, %p137
      %p139 = scmp.ne.s32.totalorder %s127, %s128
      %p140 = scmp.eq.s32.totalorder %s29, 1
      %p141 = por %p139, %p140
      %p143 = scmp.ne.s32.totalorder %s128, %s142
      %p144 = scmp.eq.s32.totalorder %s29, 0
      %p145 = por %p143, %p144
      %s147 = sadd.s32 %s146, 1
      %p150 = scmp.eq.s32.totalorder %s23, 1
      %p151 = scmp.ne.s32.totalorder %s146, %s148
      %p152 = scmp.eq.s32.totalorder %s23, 0
      %p153 = por %p151, %p152
      %p154 = scmp.ne.s32.totalorder %s146, %s148
      %p155 = scmp.eq.s32.totalorder %s28, 1
      %p156 = por %p154, %p155
      %p157 = scmp.ne.s32.totalorder %s148, %s149
      %p158 = scmp.eq.s32.totalorder %s28, 0
      %p159 = por %p157, %p158
      %p160 = scmp.ne.s32.totalorder %s148, %s149
      %p161 = scmp.eq.s32.totalorder %s29, 1
      %p162 = por %p160, %p161
      %p164 = scmp.ne.s32.totalorder %s149, %s163
      %p165 = scmp.eq.s32.totalorder %s29, 0
      %p166 = por %p164, %p165
      %s168 = sadd.s32 %s167, 1
      %p171 = scmp.eq.s32.totalorder %s23, 1
      %p172 = scmp.ne.s32.totalorder %s167, %s169
      %p173 = scmp.eq.s32.totalorder %s23, 0
      %p174 = por %p172, %p173
      %p175 = scmp.ne.s32.totalorder %s167, %s169
      %p176 = scmp.eq.s32.totalorder %s28, 1
      %p177 = por %p175, %p176
      %p178 = scmp.ne.s32.totalorder %s169, %s170
      %p179 = scmp.eq.s32.totalorder %s28, 0
      %p180 = por %p178, %p179
      %p181 = scmp.ne.s32.totalorder %s169, %s170
      %p182 = scmp.eq.s32.totalorder %s29, 1
      %p183 = por %p181, %p182
      %p185 = scmp.ne.s32.totalorder %s170, %s184
      %p186 = scmp.eq.s32.totalorder %s29, 0
      %p187 = por %p185, %p186
      %s189 = sadd.s32 %s188, 1
      %p192 = scmp.eq.s32.totalorder %s23, 1
      %p193 = scmp.ne.s32.totalorder %s188, %s190
      %p194 = scmp.eq.s32.totalorder %s23, 0
      %p195 = por %p193, %p194
      %p196 = scmp.ne.s32.totalorder %s188, %s190
      %p197 = scmp.eq.s32.totalorder %s28, 1
      %p198 = por %p196, %p197
      %p199 = scmp.ne.s32.totalorder %s190, %s191
      %p200 = scmp.eq.s32.totalorder %s28, 0
      %p201 = por %p199, %p200
      %p202 = scmp.ne.s32.totalorder %s190, %s191
      %p203 = scmp.eq.s32.totalorder %s29, 1
      %p204 = por %p202, %p203
      %p206 = scmp.ne.s32.totalorder %s191, %s205
      %p207 = scmp.eq.s32.totalorder %s29, 0
      %p208 = por %p206, %p207
      %s209 = ssub.s32 %s23, %s30
      %p210 = scmp.eq.s32.totalorder %s209, 0
      %s212 = sadd.s32 %s211, 1
      %s213 = scalar_select %p210, %s211, %s212
      %p216 = pneg %p210
      %p217 = scmp.eq.s32.totalorder %s23, 1
      %p218 = por %p216, %p217
      %p219 = scmp.ne.s32.totalorder %s211, %s214
      %p220 = scmp.eq.s32.totalorder %s23, 0
      %p221 = por %p219, %p220
      %p222 = scmp.ne.s32.totalorder %s211, %s214
      %p223 = scmp.eq.s32.totalorder %s28, 1
      %p224 = por %p222, %p223
      %p225 = scmp.ne.s32.totalorder %s214, %s215
      %p226 = scmp.eq.s32.totalorder %s28, 0
      %p227 = por %p225, %p226
      %p228 = scmp.ne.s32.totalorder %s214, %s215
      %p229 = scmp.eq.s32.totalorder %s29, 1
      %p230 = por %p228, %p229
      %p232 = scmp.ne.s32.totalorder %s215, %s231
      %p233 = scmp.eq.s32.totalorder %s29, 0
      %p234 = por %p232, %p233
      %p235 = scmp.le.s32.totalorder 1, %s23
      %p236 = scmp.lt.s32.totalorder %s23, 3
      %p237 = pnand %p235, %p236
      %p238 = pneg %p237
      // Predicated region
      $region9: #{tpu_custom_call.1} parent=5 // pred_check
        _
      $region10: #{tpu_custom_call.1} parent=5 // pred_check_branch
        %240 = sbr.rel (%p237) target = $region12
      $region11: #{tpu_custom_call.1} parent=5 // pred_region
        %s241 = ssub.s32 %s23, 1
        // Predicated region
        $region13: #{tpu_custom_call.1} parent=11 // pred_check
          %p242 = pneg %p96
        $region14: #{tpu_custom_call.1} parent=11 // pred_check_branch
          %244 = sbr.rel (%p242) target = $region16
        $region15: #{tpu_custom_call.1} parent=11 // pred_region
          _
        $region16: #{tpu_custom_call.1} parent=11 // pred_fallthru
          _
        // Predicated region
        $region17: #{tpu_custom_call.1} parent=11 // pred_check
          %p245 = pneg %p117
        $region18: #{tpu_custom_call.1} parent=11 // pred_check_branch
          %247 = sbr.rel (%p245) target = $region20
        $region19: #{tpu_custom_call.1} parent=11 // pred_region
          _
        $region20: #{tpu_custom_call.1} parent=11 // pred_fallthru
          _
        // Predicated region
        $region21: #{tpu_custom_call.1} parent=11 // pred_check
          %p248 = pneg %p138
        $region22: #{tpu_custom_call.1} parent=11 // pred_check_branch
          %250 = sbr.rel (%p248) target = $region24
        $region23: #{tpu_custom_call.1} parent=11 // pred_region
          _
        $region24: #{tpu_custom_call.1} parent=11 // pred_fallthru
          _
        // Predicated region
        $region25: #{tpu_custom_call.1} parent=11 // pred_check
          %p251 = pneg %p159
        $region26: #{tpu_custom_call.1} parent=11 // pred_check_branch
          %253 = sbr.rel (%p251) target = $region28
        $region27: #{tpu_custom_call.1} parent=11 // pred_region
          _
        $region28: #{tpu_custom_call.1} parent=11 // pred_fallthru
          _
        // Predicated region
        $region29: #{tpu_custom_call.1} parent=11 // pred_check
          %p254 = pneg %p180
        $region30: #{tpu_custom_call.1} parent=11 // pred_check_branch
          %256 = sbr.rel (%p254) target = $region32
        $region31: #{tpu_custom_call.1} parent=11 // pred_region
          _
        $region32: #{tpu_custom_call.1} parent=11 // pred_fallthru
          _
        // Predicated region
        $region33: #{tpu_custom_call.1} parent=11 // pred_check
          %p257 = pneg %p201
        $region34: #{tpu_custom_call.1} parent=11 // pred_check_branch
          %259 = sbr.rel (%p257) target = $region36
        $region35: #{tpu_custom_call.1} parent=11 // pred_region
          _
        $region36: #{tpu_custom_call.1} parent=11 // pred_fallthru
          _
      $region12: #{tpu_custom_call.1} parent=5 // pred_fallthru
        _
      %p260 = scmp.lt.s32.totalorder %s23, 2
      // Predicated region
      $region37: #{tpu_custom_call.1} parent=5 // pred_check
        %p261 = pneg %p260
      $region38: #{tpu_custom_call.1} parent=5 // pred_check_branch
        %263 = sbr.rel (%p261) target = $region40
      $region39: #{tpu_custom_call.1} parent=5 // pred_region
        // Predicated region
        $region41: #{tpu_custom_call.1} parent=39 // pred_check
          %p264 = pneg %p43
        $region42: #{tpu_custom_call.1} parent=39 // pred_check_branch
          %266 = sbr.rel (%p264) target = $region44
        $region43: #{tpu_custom_call.1} parent=39 // pred_region
          %s267 = sand.u32 %s33, 1
          %s268 = scalar_lea.sflag [#allocation3], %s267
          %s269 = sand.u32 %s33, 1
          %s270 = smul.addr %s269, 12
          %s271 = scalar_lea.vmem [#allocation2], %s270
          %s273 = ssub.s32 192, 192
          %274 = vsyncadd %s268, %s273
          %s275 = smul.addr %s23, 3
          %s276 = smul.addr %s275, 64
          %s277 = scalar_lea.hbm %s0, %s276
          %s279 = sshll.u32 %s271, 4
          %s280 = int_to_ptr.vmem [resolvable:$true] %s279
          %282 = dma.hbm_to_vmem [thread:$0]  %s277, 192, %s280, %s268
        $region44: #{tpu_custom_call.1} parent=39 // pred_fallthru
          _
        // Predicated region
        $region45: #{tpu_custom_call.1} parent=39 // pred_check
          %p283 = pneg %p69
        $region46: #{tpu_custom_call.1} parent=39 // pred_check_branch
          %285 = sbr.rel (%p283) target = $region48
        $region47: #{tpu_custom_call.1} parent=39 // pred_region
          %s286 = sand.u32 %s59, 1
          %s287 = scalar_lea.sflag [#allocation6], %s286
          %s288 = sand.u32 %s59, 1
          %s289 = smul.addr %s288, 16
          %s290 = scalar_lea.vmem [#allocation5], %s289
          %s292 = ssub.s32 256, 256
          %293 = vsyncadd %s287, %s292
          %s294 = smul.addr %s23, 2
          %s295 = smul.addr %s294, 128
          %s296 = scalar_lea.hbm %s1, %s295
          %s298 = sshll.u32 %s290, 4
          %s299 = int_to_ptr.vmem [resolvable:$true] %s298
          %301 = dma.hbm_to_vmem [thread:$0]  %s296, 256, %s299, %s287
        $region48: #{tpu_custom_call.1} parent=39 // pred_fallthru
          _
      $region40: #{tpu_custom_call.1} parent=5 // pred_fallthru
        _
      %p302 = scmp.le.s32.totalorder 1, %s23
      %p303 = scmp.lt.s32.totalorder %s23, 3
      %p304 = pnand %p302, %p303
      %p305 = pneg %p304
      // Predicated region
      $region49: #{tpu_custom_call.1} parent=5 // pred_check
        _
      $region50: #{tpu_custom_call.1} parent=5 // pred_check_branch
        %307 = sbr.rel (%p304) target = $region52
      $region51: #{tpu_custom_call.1} parent=5 // pred_region
        %s308 = ssub.s32 %s23, 1
        %s309 = sand.u32 %s36, 1
        %s310 = scalar_lea.sflag [#allocation3], %s309
        %s311 = sand.u32 %s36, 1
        %s312 = smul.addr %s311, 12
        %s313 = scalar_lea.vmem [#allocation2], %s312
        // Predicated region
        $region53: #{tpu_custom_call.1} parent=51 // pred_check
          %p314 = pneg %p49
        $region54: #{tpu_custom_call.1} parent=51 // pred_check_branch
          %316 = sbr.rel (%p314) target = $region56
        $region55: #{tpu_custom_call.1} parent=51 // pred_region
          %317 = dma.done %s310, 192
        $region56: #{tpu_custom_call.1} parent=51 // pred_fallthru
          _
        %s318 = sand.u32 %s62, 1
        %s319 = scalar_lea.sflag [#allocation6], %s318
        %s320 = sand.u32 %s62, 1
        %s321 = smul.addr %s320, 16
        %s322 = scalar_lea.vmem [#allocation5], %s321
        // Predicated region
        $region57: #{tpu_custom_call.1} parent=51 // pred_check
          %p323 = pneg %p75
        $region58: #{tpu_custom_call.1} parent=51 // pred_check_branch
          %325 = sbr.rel (%p323) target = $region60
        $region59: #{tpu_custom_call.1} parent=51 // pred_region
          %326 = dma.done %s319, 256
        $region60: #{tpu_custom_call.1} parent=51 // pred_fallthru
          _
        %s327 = sand.u32 %s36, 1
        %s328 = scalar_lea.sflag [#allocation3], %s327
        %s329 = sand.u32 %s36, 1
        %s330 = smul.addr %s329, 12
        %s331 = scalar_lea.vmem [#allocation2], %s330
        %p332 = pneg %p49
        %p333 = pneg %p46
        %s334 = sand.u32 %s62, 1
        %s335 = scalar_lea.sflag [#allocation6], %s334
        %s336 = sand.u32 %s62, 1
        %s337 = smul.addr %s336, 16
        %s338 = scalar_lea.vmem [#allocation5], %s337
        %p339 = pneg %p75
        %p340 = pneg %p72
        %p341 = pneg %p96
        %p342 = pneg %p93
        %p343 = pneg %p117
        %p344 = pneg %p114
        %p345 = pneg %p138
        %p346 = pneg %p135
        %p347 = pneg %p159
        %p348 = pneg %p156
        %p349 = pneg %p180
        %p350 = pneg %p177
        %p351 = pneg %p201
        %p352 = pneg %p198
        %p353 = pneg %p227
        %p354 = pneg %p224
        %s355 = sand.u32 %s214, 1
        %s356 = scalar_lea.sflag [#allocation4], %s355
        %s357 = sand.u32 %s214, 1
        %s358 = smul.addr %s357, 8
        %s359 = scalar_lea.vmem [#allocation7], %s358
        %v360 = vld [vmem:[%s4] sm:$0xf]
        %v361 = vld [vmem:[%s322] sm:$0xff]
        %v362 = vld [vmem:[%s322 + $0x8] sm:$0xff]
        %v363 = vld [vmem:[%s313] sm:$0xff]
        %v364 = vld [vmem:[%s2] sm:$0x3]
        %v366 = vlaneseq
        %v367 = vshrl.u32 %v366, 7
        %v368 = vsub.s32 0, %v367
        %v369 = vrot.slane %v364, %v368
        %v370 = vlaneseq
        %v371 = vshrl.u32 %v370, 7
        %v372 = vsub.s32 1, %v371
        %v373 = vrot.slane %v364, %v372
        %v374 = vcombine.low %v369, %v373
        %v376 = vmul.f32 %v363, %v374
        %v377 = vld [vmem:[%s3] sm:$0xf]
        %v379 = vcombine.high %v376, %v376
        %vm380 = vcmask 31744
        %v382 = vsel %vm380, %v377, 0
        %vm384 = vcmask 1043456
        %v385 = vsel %vm384, %v376, 0
        %v387 = vsel %vm384, %v379, 0
        %389 = vmatprep.subr.mxu0 %v387
        %390 = vmatpush1.msra.mxu0 %v385
        %391 = vmatprep.subr.mxu0 0.0
        %392 = vmatpush1.msra.mxu0 0.0
        %393 = vmatprep.subr.mxu0 0.0
        %394 = vmatpush1.msra.mxu0 0.0
        %395 = vmatprep.subr.mxu0 0.0
        %396 = vmatpush1.msra.mxu0 0.0
        %397 = vmatprep.subr.mxu0 0.0
        %398 = vmatpush1.msra.mxu0 0.0
        %399 = vmatprep.subr.mxu0 0.0
        %400 = vmatpush1.msra.mxu0 0.0
        %401 = vmatprep.subr.mxu0 0.0
        %402 = vmatpush1.msra.mxu0 0.0
        %403 = vmatprep.subr.mxu0 0.0
        %404 = vmatpush1.msra.mxu0 0.0
        %405 = vmatprep.subr.mxu0 0.0
        %406 = vmatpush1.msra.mxu0 0.0
        %407 = vmatprep.subr.mxu0 0.0
        %408 = vmatpush1.msra.mxu0 0.0
        %409 = vmatprep.subr.mxu0 0.0
        %410 = vmatpush1.msra.mxu0 0.0
        %411 = vmatprep.subr.mxu0 0.0
        %412 = vmatpush1.msra.mxu0 0.0
        %413 = vmatprep.subr.mxu0 0.0
        %414 = vmatpush1.msra.mxu0 0.0
        %415 = vmatprep.subr.mxu0 0.0
        %416 = vmatpush1.msra.mxu0 0.0
        %417 = vmatprep.subr.mxu0 0.0
        %418 = vmatpush1.msra.mxu0 0.0
        %419 = vmatprep.subr.mxu0 0.0
        %420 = vmatpush1.msra.mxu0 0.0
        %421 = vmatprep.subr.mxu0 0.0
        %422 = vmatpush1.msra.mxu0 0.0
        %423 = vmatprep.subr.mxu0 0.0
        %424 = vmatpush1.msra.mxu0 0.0
        %425 = vmatprep.subr.mxu0 0.0
        %426 = vmatpush1.msra.mxu0 0.0
        %427 = vmatprep.subr.mxu0 0.0
        %428 = vmatpush1.msra.mxu0 0.0
        %429 = vmatprep.subr.mxu0 0.0
        %430 = vmatpush1.msra.mxu0 0.0
        %431 = vmatprep.subr.mxu0 0.0
        %432 = vmatpush1.msra.mxu0 0.0
        %433 = vmatprep.subr.mxu0 0.0
        %434 = vmatpush1.msra.mxu0 0.0
        %435 = vmatprep.subr.mxu0 0.0
        %436 = vmatpush1.msra.mxu0 0.0
        %437 = vmatprep.subr.mxu0 0.0
        %438 = vmatpush1.msra.mxu0 0.0
        %439 = vmatprep.subr.mxu0 0.0
        %440 = vmatpush1.msra.mxu0 0.0
        %441 = vmatprep.subr.mxu0 0.0
        %442 = vmatpush1.msra.mxu0 0.0
        %443 = vmatprep.subr.mxu0 0.0
        %444 = vmatpush1.msra.mxu0 0.0
        %445 = vmatprep.subr.mxu0 0.0
        %446 = vmatpush1.msra.mxu0 0.0
        %447 = vmatprep.subr.mxu0 0.0
        %448 = vmatpush1.msra.mxu0 0.0
        %449 = vmatprep.subr.mxu0 0.0
        %450 = vmatpush1.msra.mxu0 0.0
        %451 = vmatprep.subr.mxu0 0.0
        %452 = vmatpush1.msra.mxu0 0.0
        %453 = vmatprep.mubr.f32.mxu0 0.0
        %454 = vmatmul.mubr.f32.gmra.mrb[0].mxu0 %v382
        %v455 = vpop.f32.mrb[0].mxu0
        %v456 = vadd.f32 0.0, %v455
        %v457 = vpop.f32.mrb[0].mxu0
        %v458 = vadd.f32 0.0, %v457
        %459 = vdwg.mxu0
        %vm460 = vcmask 64512
        %v462 = vsel %vm460, %v360, 0
        %464 = vmatprep.subr.mxu0 %v362
        %465 = vmatpush1.msra.mxu0 %v361
        %466 = vmatprep.subr.mxu0 0.0
        %467 = vmatpush1.msra.mxu0 0.0
        %468 = vmatprep.subr.mxu0 0.0
        %469 = vmatpush1.msra.mxu0 0.0
        %470 = vmatprep.subr.mxu0 0.0
        %471 = vmatpush1.msra.mxu0 0.0
        %472 = vmatprep.subr.mxu0 0.0
        %473 = vmatpush1.msra.mxu0 0.0
        %474 = vmatprep.subr.mxu0 0.0
        %475 = vmatpush1.msra.mxu0 0.0
        %476 = vmatprep.subr.mxu0 0.0
        %477 = vmatpush1.msra.mxu0 0.0
        %478 = vmatprep.subr.mxu0 0.0
        %479 = vmatpush1.msra.mxu0 0.0
        %480 = vmatprep.subr.mxu0 0.0
        %481 = vmatpush1.msra.mxu0 0.0
        %482 = vmatprep.subr.mxu0 0.0
        %483 = vmatpush1.msra.mxu0 0.0
        %484 = vmatprep.subr.mxu0 0.0
        %485 = vmatpush1.msra.mxu0 0.0
        %486 = vmatprep.subr.mxu0 0.0
        %487 = vmatpush1.msra.mxu0 0.0
        %488 = vmatprep.subr.mxu0 0.0
        %489 = vmatpush1.msra.mxu0 0.0
        %490 = vmatprep.subr.mxu0 0.0
        %491 = vmatpush1.msra.mxu0 0.0
        %492 = vmatprep.subr.mxu0 0.0
        %493 = vmatpush1.msra.mxu0 0.0
        %494 = vmatprep.subr.mxu0 0.0
        %495 = vmatpush1.msra.mxu0 0.0
        %496 = vmatprep.subr.mxu0 0.0
        %497 = vmatpush1.msra.mxu0 0.0
        %498 = vmatprep.subr.mxu0 0.0
        %499 = vmatpush1.msra.mxu0 0.0
        %500 = vmatprep.subr.mxu0 0.0
        %501 = vmatpush1.msra.mxu0 0.0
        %502 = vmatprep.subr.mxu0 0.0
        %503 = vmatpush1.msra.mxu0 0.0
        %504 = vmatprep.subr.mxu0 0.0
        %505 = vmatpush1.msra.mxu0 0.0
        %506 = vmatprep.subr.mxu0 0.0
        %507 = vmatpush1.msra.mxu0 0.0
        %508 = vmatprep.subr.mxu0 0.0
        %509 = vmatpush1.msra.mxu0 0.0
        %510 = vmatprep.subr.mxu0 0.0
        %511 = vmatpush1.msra.mxu0 0.0
        %512 = vmatprep.subr.mxu0 0.0
        %513 = vmatpush1.msra.mxu0 0.0
        %514 = vmatprep.subr.mxu0 0.0
        %515 = vmatpush1.msra.mxu0 0.0
        %516 = vmatprep.subr.mxu0 0.0
        %517 = vmatpush1.msra.mxu0 0.0
        %518 = vmatprep.subr.mxu0 0.0
        %519 = vmatpush1.msra.mxu0 0.0
        %520 = vmatprep.subr.mxu0 0.0
        %521 = vmatpush1.msra.mxu0 0.0
        %522 = vmatprep.subr.mxu0 0.0
        %523 = vmatpush1.msra.mxu0 0.0
        %524 = vmatprep.subr.mxu0 0.0
        %525 = vmatpush1.msra.mxu0 0.0
        %526 = vmatprep.subr.mxu0 0.0
        %527 = vmatpush1.msra.mxu0 0.0
        %528 = vmatprep.mubr.f32.mxu0 0.0
        %529 = vmatmul.mubr.f32.gmra.mrb[0].mxu0 %v462
        %v530 = vpop.f32.mrb[0].mxu0
        %v531 = vadd.f32 %v456, %v530
        %v532 = vpop.f32.mrb[0].mxu0
        %v533 = vadd.f32 %v458, %v532
        %534 = vdwg.mxu0
        %v535 = vld [vmem:[%s313] sm:$0xff]
        %v536 = vld [vmem:[%s313 + $0x8] sm:$0xf]
        %s537 = scalar_lea.vmem %s2, 2
        %v538 = vld [vmem:[%s537] sm:$0x3]
        %v540 = vlaneseq
        %v541 = vshrl.u32 %v540, 7
        %v542 = vsub.s32 0, %v541
        %v543 = vrot.slane %v538, %v542
        %v544 = vlaneseq
        %v545 = vshrl.u32 %v544, 7
        %v546 = vsub.s32 1, %v545
        %v547 = vrot.slane %v538, %v546
        %v548 = vcombine.low %v543, %v547
        %549 = vrot.lane.b32.xlu0 %v548, 1
        %v550 = vpop.permute.xlu0 %549
        %v551 = vrot.slane %v550, 4
        %vm552 = vcmask 7168
        %v553 = vsel %vm552, %v551, %v550
        %v556 = vmul.f32 %v535, %v553
        %v557 = vmul.f32 %v536, %v551
        %s558 = scalar_lea.vmem %s3, 4
        %v559 = vld [vmem:[%s558] sm:$0xf]
        %v562 = vcombine.high %v556, %v556
        %563 = vrot.lane.b32.xlu0 %v556, 127
        %v564 = vpop.permute.xlu0 %563
        %565 = vrot.lane.b32.xlu0 %v562, 127
        %v566 = vpop.permute.xlu0 %565
        %567 = vrot.lane.b32.xlu0 %v557, 127
        %v568 = vpop.permute.xlu0 %567
        %vm569 = vcmask 1039360
        %v570 = vsel %vm569, %v564, %v566
        %v571 = vsel %vm569, %v566, %v568
        %v573 = vsel %vm380, %v559, 0
        %v575 = vsel %vm384, %v570, 0
        %v577 = vsel %vm384, %v571, 0
        %579 = vmatprep.subr.mxu0 %v577
        %580 = vmatpush1.msra.mxu0 %v575
        %581 = vmatprep.subr.mxu0 0.0
        %582 = vmatpush1.msra.mxu0 0.0
        %583 = vmatprep.subr.mxu0 0.0
        %584 = vmatpush1.msra.mxu0 0.0
        %585 = vmatprep.subr.mxu0 0.0
        %586 = vmatpush1.msra.mxu0 0.0
        %587 = vmatprep.subr.mxu0 0.0
        %588 = vmatpush1.msra.mxu0 0.0
        %589 = vmatprep.subr.mxu0 0.0
        %590 = vmatpush1.msra.mxu0 0.0
        %591 = vmatprep.subr.mxu0 0.0
        %592 = vmatpush1.msra.mxu0 0.0
        %593 = vmatprep.subr.mxu0 0.0
        %594 = vmatpush1.msra.mxu0 0.0
        %595 = vmatprep.subr.mxu0 0.0
        %596 = vmatpush1.msra.mxu0 0.0
        %597 = vmatprep.subr.mxu0 0.0
        %598 = vmatpush1.msra.mxu0 0.0
        %599 = vmatprep.subr.mxu0 0.0
        %600 = vmatpush1.msra.mxu0 0.0
        %601 = vmatprep.subr.mxu0 0.0
        %602 = vmatpush1.msra.mxu0 0.0
        %603 = vmatprep.subr.mxu0 0.0
        %604 = vmatpush1.msra.mxu0 0.0
        %605 = vmatprep.subr.mxu0 0.0
        %606 = vmatpush1.msra.mxu0 0.0
        %607 = vmatprep.subr.mxu0 0.0
        %608 = vmatpush1.msra.mxu0 0.0
        %609 = vmatprep.subr.mxu0 0.0
        %610 = vmatpush1.msra.mxu0 0.0
        %611 = vmatprep.subr.mxu0 0.0
        %612 = vmatpush1.msra.mxu0 0.0
        %613 = vmatprep.subr.mxu0 0.0
        %614 = vmatpush1.msra.mxu0 0.0
        %615 = vmatprep.subr.mxu0 0.0
        %616 = vmatpush1.msra.mxu0 0.0
        %617 = vmatprep.subr.mxu0 0.0
        %618 = vmatpush1.msra.mxu0 0.0
        %619 = vmatprep.subr.mxu0 0.0
        %620 = vmatpush1.msra.mxu0 0.0
        %621 = vmatprep.subr.mxu0 0.0
        %622 = vmatpush1.msra.mxu0 0.0
        %623 = vmatprep.subr.mxu0 0.0
        %624 = vmatpush1.msra.mxu0 0.0
        %625 = vmatprep.subr.mxu0 0.0
        %626 = vmatpush1.msra.mxu0 0.0
        %627 = vmatprep.subr.mxu0 0.0
        %628 = vmatpush1.msra.mxu0 0.0
        %629 = vmatprep.subr.mxu0 0.0
        %630 = vmatpush1.msra.mxu0 0.0
        %631 = vmatprep.subr.mxu0 0.0
        %632 = vmatpush1.msra.mxu0 0.0
        %633 = vmatprep.subr.mxu0 0.0
        %634 = vmatpush1.msra.mxu0 0.0
        %635 = vmatprep.subr.mxu0 0.0
        %636 = vmatpush1.msra.mxu0 0.0
        %637 = vmatprep.subr.mxu0 0.0
        %638 = vmatpush1.msra.mxu0 0.0
        %639 = vmatprep.subr.mxu0 0.0
        %640 = vmatpush1.msra.mxu0 0.0
        %641 = vmatprep.subr.mxu0 0.0
        %642 = vmatpush1.msra.mxu0 0.0
        %643 = vmatprep.mubr.f32.mxu0 0.0
        %644 = vmatmul.mubr.f32.gmra.mrb[0].mxu0 %v573
        %v645 = vpop.f32.mrb[0].mxu0
        %v646 = vadd.f32 0.0, %v645
        %v647 = vpop.f32.mrb[0].mxu0
        %v648 = vadd.f32 0.0, %v647
        %649 = vdwg.mxu0
        %v650 = vadd.f32 %v531, %v646
        %v651 = vadd.f32 %v533, %v648
        %v652 = vld [vmem:[%s313] sm:$0xff]
        %v653 = vld [vmem:[%s313 + $0x8] sm:$0xf]
        %s654 = scalar_lea.vmem %s3, 8
        %v655 = vld [vmem:[%s654] sm:$0xf]
        %v658 = vcombine.high %v652, %v652
        %659 = vrot.lane.b32.xlu0 %v652, 126
        %v660 = vpop.permute.xlu0 %659
        %661 = vrot.lane.b32.xlu0 %v658, 126
        %v662 = vpop.permute.xlu0 %661
        %663 = vrot.lane.b32.xlu0 %v653, 126
        %v664 = vpop.permute.xlu0 %663
        %vm665 = vcmask 1031168
        %v666 = vsel %vm665, %v660, %v662
        %v667 = vsel %vm665, %v662, %v664
        %v669 = vsel %vm380, %v655, 0
        %v671 = vsel %vm384, %v666, 0
        %v673 = vsel %vm384, %v667, 0
        %675 = vmatprep.subr.mxu0 %v673
        %676 = vmatpush1.msra.mxu0 %v671
        %677 = vmatprep.subr.mxu0 0.0
        %678 = vmatpush1.msra.mxu0 0.0
        %679 = vmatprep.subr.mxu0 0.0
        %680 = vmatpush1.msra.mxu0 0.0
        %681 = vmatprep.subr.mxu0 0.0
        %682 = vmatpush1.msra.mxu0 0.0
        %683 = vmatprep.subr.mxu0 0.0
        %684 = vmatpush1.msra.mxu0 0.0
        %685 = vmatprep.subr.mxu0 0.0
        %686 = vmatpush1.msra.mxu0 0.0
        %687 = vmatprep.subr.mxu0 0.0
        %688 = vmatpush1.msra.mxu0 0.0
        %689 = vmatprep.subr.mxu0 0.0
        %690 = vmatpush1.msra.mxu0 0.0
        %691 = vmatprep.subr.mxu0 0.0
        %692 = vmatpush1.msra.mxu0 0.0
        %693 = vmatprep.subr.mxu0 0.0
        %694 = vmatpush1.msra.mxu0 0.0
        %695 = vmatprep.subr.mxu0 0.0
        %696 = vmatpush1.msra.mxu0 0.0
        %697 = vmatprep.subr.mxu0 0.0
        %698 = vmatpush1.msra.mxu0 0.0
        %699 = vmatprep.subr.mxu0 0.0
        %700 = vmatpush1.msra.mxu0 0.0
        %701 = vmatprep.subr.mxu0 0.0
        %702 = vmatpush1.msra.mxu0 0.0
        %703 = vmatprep.subr.mxu0 0.0
        %704 = vmatpush1.msra.mxu0 0.0
        %705 = vmatprep.subr.mxu0 0.0
        %706 = vmatpush1.msra.mxu0 0.0
        %707 = vmatprep.subr.mxu0 0.0
        %708 = vmatpush1.msra.mxu0 0.0
        %709 = vmatprep.subr.mxu0 0.0
        %710 = vmatpush1.msra.mxu0 0.0
        %711 = vmatprep.subr.mxu0 0.0
        %712 = vmatpush1.msra.mxu0 0.0
        %713 = vmatprep.subr.mxu0 0.0
        %714 = vmatpush1.msra.mxu0 0.0
        %715 = vmatprep.subr.mxu0 0.0
        %716 = vmatpush1.msra.mxu0 0.0
        %717 = vmatprep.subr.mxu0 0.0
        %718 = vmatpush1.msra.mxu0 0.0
        %719 = vmatprep.subr.mxu0 0.0
        %720 = vmatpush1.msra.mxu0 0.0
        %721 = vmatprep.subr.mxu0 0.0
        %722 = vmatpush1.msra.mxu0 0.0
        %723 = vmatprep.subr.mxu0 0.0
        %724 = vmatpush1.msra.mxu0 0.0
        %725 = vmatprep.subr.mxu0 0.0
        %726 = vmatpush1.msra.mxu0 0.0
        %727 = vmatprep.subr.mxu0 0.0
        %728 = vmatpush1.msra.mxu0 0.0
        %729 = vmatprep.subr.mxu0 0.0
        %730 = vmatpush1.msra.mxu0 0.0
        %731 = vmatprep.subr.mxu0 0.0
        %732 = vmatpush1.msra.mxu0 0.0
        %733 = vmatprep.subr.mxu0 0.0
        %734 = vmatpush1.msra.mxu0 0.0
        %735 = vmatprep.subr.mxu0 0.0
        %736 = vmatpush1.msra.mxu0 0.0
        %737 = vmatprep.subr.mxu0 0.0
        %738 = vmatpush1.msra.mxu0 0.0
        %739 = vmatprep.mubr.f32.mxu0 0.0
        %740 = vmatmul.mubr.f32.gmra.mrb[0].mxu0 %v669
        %v741 = vpop.f32.mrb[0].mxu0
        %v742 = vadd.f32 0.0, %v741
        %v743 = vpop.f32.mrb[0].mxu0
        %v744 = vadd.f32 0.0, %v743
        %745 = vdwg.mxu0
        %v746 = vadd.f32 %v650, %v742
        %v747 = vadd.f32 %v651, %v744
        %v748 = vld [vmem:[%s5] sm:$0xf]
        %750 = vset.pattern.permute.xlu0 0
        %751 = vperm.xlu0 %750, %v748
        %v752 = vpop.permute.xlu0 %751
        %v754 = vadd.f32 %v746, %v752
        %v755 = vadd.f32 %v747, %v752
        %v756 = vmax.f32 %v754, 0.0
        %v757 = vmax.f32 %v755, 0.0
        %v758 = vld [vmem:[%s6] sm:$0xf]
        %v759 = vld [vmem:[%s7] sm:$0xf]
        %761 = vset.pattern.permute.xlu0 0
        %762 = vperm.xlu0 %761, %v759
        %v763 = vpop.permute.xlu0 %762
        %v766 = vsel %vm380, %v758, 0
        %v769 = vsel %vm384, %v756, 0
        %v772 = vsel %vm384, %v757, 0
        %774 = vmatprep.subr.mxu0 %v772
        %775 = vmatpush1.msra.mxu0 %v769
        %776 = vmatprep.subr.mxu0 0.0
        %777 = vmatpush1.msra.mxu0 0.0
        %778 = vmatprep.subr.mxu0 0.0
        %779 = vmatpush1.msra.mxu0 0.0
        %780 = vmatprep.subr.mxu0 0.0
        %781 = vmatpush1.msra.mxu0 0.0
        %782 = vmatprep.subr.mxu0 0.0
        %783 = vmatpush1.msra.mxu0 0.0
        %784 = vmatprep.subr.mxu0 0.0
        %785 = vmatpush1.msra.mxu0 0.0
        %786 = vmatprep.subr.mxu0 0.0
        %787 = vmatpush1.msra.mxu0 0.0
        %788 = vmatprep.subr.mxu0 0.0
        %789 = vmatpush1.msra.mxu0 0.0
        %790 = vmatprep.subr.mxu0 0.0
        %791 = vmatpush1.msra.mxu0 0.0
        %792 = vmatprep.subr.mxu0 0.0
        %793 = vmatpush1.msra.mxu0 0.0
        %794 = vmatprep.subr.mxu0 0.0
        %795 = vmatpush1.msra.mxu0 0.0
        %796 = vmatprep.subr.mxu0 0.0
        %797 = vmatpush1.msra.mxu0 0.0
        %798 = vmatprep.subr.mxu0 0.0
        %799 = vmatpush1.msra.mxu0 0.0
        %800 = vmatprep.subr.mxu0 0.0
        %801 = vmatpush1.msra.mxu0 0.0
        %802 = vmatprep.subr.mxu0 0.0
        %803 = vmatpush1.msra.mxu0 0.0
        %804 = vmatprep.subr.mxu0 0.0
        %805 = vmatpush1.msra.mxu0 0.0
        %806 = vmatprep.subr.mxu0 0.0
        %807 = vmatpush1.msra.mxu0 0.0
        %808 = vmatprep.subr.mxu0 0.0
        %809 = vmatpush1.msra.mxu0 0.0
        %810 = vmatprep.subr.mxu0 0.0
        %811 = vmatpush1.msra.mxu0 0.0
        %812 = vmatprep.subr.mxu0 0.0
        %813 = vmatpush1.msra.mxu0 0.0
        %814 = vmatprep.subr.mxu0 0.0
        %815 = vmatpush1.msra.mxu0 0.0
        %816 = vmatprep.subr.mxu0 0.0
        %817 = vmatpush1.msra.mxu0 0.0
        %818 = vmatprep.subr.mxu0 0.0
        %819 = vmatpush1.msra.mxu0 0.0
        %820 = vmatprep.subr.mxu0 0.0
        %821 = vmatpush1.msra.mxu0 0.0
        %822 = vmatprep.subr.mxu0 0.0
        %823 = vmatpush1.msra.mxu0 0.0
        %824 = vmatprep.subr.mxu0 0.0
        %825 = vmatpush1.msra.mxu0 0.0
        %826 = vmatprep.subr.mxu0 0.0
        %827 = vmatpush1.msra.mxu0 0.0
        %828 = vmatprep.subr.mxu0 0.0
        %829 = vmatpush1.msra.mxu0 0.0
        %830 = vmatprep.subr.mxu0 0.0
        %831 = vmatpush1.msra.mxu0 0.0
        %832 = vmatprep.subr.mxu0 0.0
        %833 = vmatpush1.msra.mxu0 0.0
        %834 = vmatprep.subr.mxu0 0.0
        %835 = vmatpush1.msra.mxu0 0.0
        %836 = vmatprep.subr.mxu0 0.0
        %837 = vmatpush1.msra.mxu0 0.0
        %838 = vmatprep.mubr.f32.mxu0 0.0
        %839 = vmatmul.mubr.f32.gmra.mrb[0].mxu0 %v766
        %v840 = vpop.f32.mrb[0].mxu0
        %v841 = vadd.f32 %v763, %v840
        %v842 = vpop.f32.mrb[0].mxu0
        %v843 = vadd.f32 %v763, %v842
        %844 = vdwg.mxu0
        %v847 = vadd.f32 %v841, %v666
        %v848 = vadd.f32 %v843, %v667
        %v851 = vcombine.low %v847, %v848
        %853 = vst [vmem:[%s359] sm:$0xff] %v851
        %s854 = sand.u32 %s214, 1
        %s855 = scalar_lea.sflag [#allocation4], %s854
        %s856 = sand.u32 %s214, 1
        %s857 = smul.addr %s856, 8
        %s858 = scalar_lea.vmem [#allocation7], %s857
        // Predicated region
        $region61: #{tpu_custom_call.1} parent=51 // pred_check
          %p859 = pneg %p224
        $region62: #{tpu_custom_call.1} parent=51 // pred_check_branch
          %861 = sbr.rel (%p859) target = $region64
        $region63: #{tpu_custom_call.1} parent=51 // pred_region
          %s863 = ssub.s32 128, 128
          %864 = vsyncadd %s855, %s863
          %s865 = smul.addr %s28, 2
          %s866 = smul.addr %s865, 64
          %s867 = scalar_lea.hbm %s8, %s866
          %s869 = sshll.u32 %s858, 4
          %s870 = int_to_ptr.vmem [resolvable:$true] %s869
          %872 = dma.vmem_to_hbm [thread:$0]  %s870, 128, %s867, %s855
        $region64: #{tpu_custom_call.1} parent=51 // pred_fallthru
          _
      $region52: #{tpu_custom_call.1} parent=5 // pred_fallthru
        _
      %p873 = scmp.le.s32.totalorder 2, %s23
      // Predicated region
      $region65: #{tpu_custom_call.1} parent=5 // pred_check
        %p874 = pneg %p873
      $region66: #{tpu_custom_call.1} parent=5 // pred_check_branch
        %876 = sbr.rel (%p874) target = $region68
      $region67: #{tpu_custom_call.1} parent=5 // pred_region
        %s877 = ssub.s32 %s23, 2
        // Predicated region
        $region69: #{tpu_custom_call.1} parent=67 // pred_check
          %p878 = pneg %p230
        $region70: #{tpu_custom_call.1} parent=67 // pred_check_branch
          %880 = sbr.rel (%p878) target = $region72
        $region71: #{tpu_custom_call.1} parent=67 // pred_region
          %s881 = sand.u32 %s215, 1
          %s882 = scalar_lea.sflag [#allocation4], %s881
          %s883 = sand.u32 %s215, 1
          %s884 = smul.addr %s883, 8
          %s885 = scalar_lea.vmem [#allocation7], %s884
          %886 = dma.done %s882, 128
        $region72: #{tpu_custom_call.1} parent=67 // pred_fallthru
          _
      $region68: #{tpu_custom_call.1} parent=5 // pred_fallthru
        _
    $region6: #{tpu_custom_call.1} parent=1 // loop_footer
      %s27 = sadd.s32 1, %s23
    $region7: #{tpu_custom_call.1} parent=1 // loop_footer_branch
      %22 = sbr.rel target = $region3
    $region8: #{tpu_custom_call.1} parent=1 // loop_exit
      _
    %887 = vsyncpa [#allocation3], 1
    %s888 = scalar_lea.sflag [#allocation3], 1
    %889 = vsyncpa %s888, 1
    %890 = vsyncpa [#allocation6], 1
    %s891 = scalar_lea.sflag [#allocation6], 1
    %892 = vsyncpa %s891, 1
    %893 = vsyncpa [#allocation4], 1
    %s894 = scalar_lea.sflag [#allocation4], 1
    %895 = vsyncpa %s894, 1

</llo_original>
